<compile_context>
chip_gen: v7x
topology: tpu7x:2x2x1
jax: 0.10.0
libtpu: 0.0.40
codegen_flags: <defaults>
</compile_context>

<pallas_src>
import jax
import jax.numpy as jnp
from jax.experimental import pallas as pl
from jax.experimental.pallas import tpu as pltpu

NUM_LABELS = 2
NPAD = 128               # class dim padded to a full lane width for the MXU matmul
IGNORE_INDEX = -100
DIFF_LANE = 2            # lane holding d = logit1 - logit0 (and the per-tile loss sum)
COUNT_LANE = 3           # lane holding the per-tile valid-token count

MAX_ROW_TILE = 2048                  # upper bound on rows per grid step
VMEM_TILE_BUDGET = 28 * 1024 * 1024  # budget for the pipelined per-tile working set
VMEM_LIMIT_BYTES = 40 * 1024 * 1024  # scoped-VMEM limit (budget + headroom; < v7x 64 MiB)


def _make_kernel(tm, m_total):
    """Build the kernel closed over the static row-tile size and true row count."""

    def kernel(x_ref, w_ref, b_ref, lab_ref, logits_ref, stats_ref):
        # x_ref:      (TM, H)     activations in their native float dtype
        # w_ref:      (H, NPAD)   bf16, columns [w0, w1, w1-w0, 0, ...]
        # b_ref:      (1, NPAD)   f32,  lanes   [b0, b1, b1-b0, 0, ...]
        # lab_ref:    (TM, 1)     int32 token labels (ignore_index = -100)
        # logits_ref: (TM, 2)     bf16 un-padded logits
        # stats_ref:  (8, NPAD)   f32; sublane 0: lane DIFF_LANE = loss sum,
        #                                          lane COUNT_LANE = valid count
        x = x_ref[...].astype(jnp.bfloat16)          # in-kernel cast (no wrapper pre-pass)
        w = w_ref[...]
        b = b_ref[...]

        # MXU matmul (bf16 in, f32 accumulate), bias add in f32.
        logits = jnp.dot(x, w, preferred_element_type=jnp.float32) + b     # (TM, NPAD)

        # Un-padded logits back to HBM (bf16 writeback halves the store bytes).
        logits_ref[...] = logits[:, :NUM_LABELS].astype(logits_ref.dtype)

        lanes = jax.lax.broadcasted_iota(jnp.int32, (tm, NPAD), 1)
        rows = jax.lax.broadcasted_iota(jnp.int32, (tm, NPAD), 0) + pl.program_id(0) * tm

        labels = lab_ref[...]                                      # (TM, 1) i32
        valid = (labels != IGNORE_INDEX) & (rows < m_total)        # (TM, NPAD)

        # Two-class cross-entropy: loss = softplus(d) for label 0, softplus(-d) for
        # label 1, with d = logit1 - logit0 already sitting in lane DIFF_LANE of the
        # matmul output.  Pure VPU/EUP elementwise work — no cross-lane reductions.
        sign = jnp.where(labels == 0, 1.0, -1.0)                   # (TM, 1) -> broadcast
        z = sign * logits
        per_tok = jnp.maximum(z, 0.0) + jnp.log(1.0 + jnp.exp(-jnp.abs(z)))

        contrib = (jnp.where(valid & (lanes == DIFF_LANE), per_tok, 0.0)
                   + jnp.where(valid & (lanes == COUNT_LANE), 1.0, 0.0))
        stats_row = jnp.sum(contrib, axis=0, keepdims=True)        # (1, NPAD)
        sub = jax.lax.broadcasted_iota(jnp.int32, (8, NPAD), 0)
        stats_ref[...] = jnp.where(sub == 0, stats_row, 0.0)       # (8,128)-aligned slab

    return kernel


def _choose_row_tile(m_rows, hidden, x_itemsize):
    """Largest 16-aligned row tile whose pipelined working set fits the VMEM budget."""
    fixed = (2 * hidden * NPAD * 2        # resident weight (allow double buffer)
             + 2 * NPAD * 4               # bias
             + 2 * 8 * NPAD * 4)          # stats output blocks
    per_row = (2 * hidden * x_itemsize    # double-buffered activation tile
               + 2 * NPAD * 4             # lane-padded int32 label block (x2 buffers)
               + 2 * NPAD * 2             # lane-padded bf16 logits output block (x2)
               + 6 * NPAD * 4)            # live f32 intermediates (logits, z, masks, ...)
    tm = (VMEM_TILE_BUDGET - fixed) // per_row
    tm = max(16, min(MAX_ROW_TILE, (tm // 16) * 16))
    m_rounded = ((m_rows + 15) // 16) * 16   # bf16-native 16-row granule (not 8)
    return min(tm, m_rounded)


def roberta_mlp_token_head(last_hidden_state, labels, weight, bias, *, row_tile=None):
    """Classification head + token-level CE of RobertaMLP_token.

    last_hidden_state: (B, S, H) float (bf16 recommended; streamed as-is, no pre-pass)
    labels:            (B, S) int, ignore_index = -100
    weight:            (H, NUM_LABELS)  (== nn.Linear.weight.T)
    bias:              (NUM_LABELS,)
    Returns (logits (B, S, 2) float32 with bf16 store precision,
             scalar mean CE loss over non-ignored tokens; NaN if all tokens ignored,
             matching PyTorch).
    """
    B, S, H = last_hidden_state.shape
    M = B * S

    x_flat = last_hidden_state.reshape(M, H)            # no dtype cast, no padding
    lab_flat = labels.reshape(M, 1).astype(jnp.int32)
    x_itemsize = jnp.dtype(x_flat.dtype).itemsize

    if row_tile is not None:
        tm = max(16, ((int(row_tile) + 15) // 16) * 16)
    else:
        tm = _choose_row_tile(M, H, x_itemsize)
    num_tiles = pl.cdiv(M, tm)

    # Padded (lane-dense) weight/bias for the MXU; column DIFF_LANE carries the class
    # margin so the kernel never has to extract a single lane.  (Tiny host-side prep.)
    w_bf = weight.astype(jnp.bfloat16)                   # (H, 2)
    w_diff = (w_bf[:, 1].astype(jnp.float32)
              - w_bf[:, 0].astype(jnp.float32)).astype(jnp.bfloat16)
    w_pad = jnp.zeros((H, NPAD), jnp.bfloat16)
    w_pad = w_pad.at[:, :NUM_LABELS].set(w_bf).at[:, DIFF_LANE].set(w_diff)

    b_f = bias.astype(jnp.float32)
    b_pad = jnp.zeros((1, NPAD), jnp.float32)
    b_pad = b_pad.at[0, :NUM_LABELS].set(b_f).at[0, DIFF_LANE].set(b_f[1] - b_f[0])

    out_shapes = (
        jax.ShapeDtypeStruct((M, NUM_LABELS), jnp.bfloat16),       # un-padded logits
        jax.ShapeDtypeStruct((num_tiles * 8, NPAD), jnp.float32),  # per-tile stats slab
    )

    cost = pl.CostEstimate(
        flops=2 * M * H * NPAD,
        transcendentals=2 * M * NPAD,
        bytes_accessed=(M * H * x_itemsize + H * NPAD * 2 + M * 4
                        + M * NUM_LABELS * 2 + num_tiles * 8 * NPAD * 4),
    )

    logits_flat, stats = pl.pallas_call(
        _make_kernel(tm, M),
        out_shape=out_shapes,
        grid=(num_tiles,),
        in_specs=[
            pl.BlockSpec((tm, H), lambda i: (i, 0)),      # pipelined activation tiles
            pl.BlockSpec((H, NPAD), lambda i: (0, 0)),    # weight stays resident
            pl.BlockSpec((1, NPAD), lambda i: (0, 0)),    # bias stays resident
            pl.BlockSpec((tm, 1), lambda i: (i, 0)),      # label tiles
        ],
        out_specs=(
            pl.BlockSpec((tm, NUM_LABELS), lambda i: (i, 0)),
            pl.BlockSpec((8, NPAD), lambda i: (i, 0)),
        ),
        compiler_params=pltpu.CompilerParams(
            dimension_semantics=("parallel",),
            vmem_limit_bytes=VMEM_LIMIT_BYTES),
        cost_estimate=cost,
    )(x_flat, w_pad, b_pad, lab_flat)

    logits = logits_flat.astype(jnp.float32).reshape(B, S, NUM_LABELS)
    # Mean over non-ignored tokens (matches CrossEntropyLoss(ignore_index=-100)).
    # NOTE: like PyTorch, this yields NaN if every token is ignore_index.
    loss = jnp.sum(stats[:, DIFF_LANE]) / jnp.sum(stats[:, COUNT_LANE])
    return logits, loss


if __name__ == "__main__":
    key = jax.random.PRNGKey(0)
    B, S, H = 2, 8, 32   # small shapes; H plays the role of config.hidden_size

    k1, k2, k3, k4, k5 = jax.random.split(key, 5)
    # stand-in for self.model(input_ids, attention_mask).last_hidden_state, produced
    # directly in bf16 (as a bf16 encoder would) -> no wrapper cast/pad pre-pass.
    last_hidden = jax.random.normal(k1, (B, S, H), dtype=jnp.float32).astype(jnp.bfloat16)
    labels = jax.random.randint(k2, (B, S), 0, NUM_LABELS).astype(jnp.int32)
    ignore_mask = jax.random.bernoulli(k3, 0.25, (B, S))
    labels = jnp.where(ignore_mask, IGNORE_INDEX, labels)

    # deterministic init of the nn.Linear(hidden_size, 2) parameters
    weight = 0.02 * jax.random.normal(k4, (H, NUM_LABELS), dtype=jnp.float32)
    bias = 0.1 * jax.random.normal(k5, (NUM_LABELS,), dtype=jnp.float32)

    head = jax.jit(roberta_mlp_token_head, static_argnames=("row_tile",))
    logits, loss = head(last_hidden, labels, weight, bias)
    jax.block_until_ready((logits, loss))

    def reference(x, lab, w, b):
        Bx, Sx, Hx = x.shape
        x_bf = x.reshape(-1, Hx).astype(jnp.bfloat16)
        w_bf = w.astype(jnp.bfloat16)
        ref_logits = (jnp.dot(x_bf, w_bf, preferred_element_type=jnp.float32)
                      + b.astype(jnp.float32))
        lab_f = lab.reshape(-1)
        valid = lab_f != IGNORE_INDEX
        lse = jax.nn.logsumexp(ref_logits, axis=-1)
        picked = jnp.take_along_axis(
            ref_logits, jnp.where(valid, lab_f, 0)[:, None], axis=-1)[:, 0]
        ref_loss = jnp.sum(jnp.where(valid, lse - picked, 0.0)) / jnp.sum(valid)
        return ref_logits.reshape(Bx, Sx, NUM_LABELS), ref_loss

    ref_logits, ref_loss = reference(last_hidden, labels, weight, bias)
    ref_logits_bf = ref_logits.astype(jnp.bfloat16).astype(jnp.float32)
    assert jnp.allclose(logits, ref_logits_bf, atol=5e-3), "logits mismatch"
    assert jnp.allclose(loss, ref_loss, atol=5e-3), "loss mismatch"

    # Second check: f32 activations, multiple row tiles and a ragged last tile
    # (M = 38 rows, TM = 16 -> 3 tiles, last one only partially valid).
    B2, S2, H2 = 2, 19, 48
    j1, j2, j3, j4, j5 = jax.random.split(jax.random.PRNGKey(1), 5)
    x2 = jax.random.normal(j1, (B2, S2, H2), dtype=jnp.float32)
    lab2 = jax.random.randint(j2, (B2, S2), 0, NUM_LABELS).astype(jnp.int32)
    lab2 = jnp.where(jax.random.bernoulli(j3, 0.2, (B2, S2)), IGNORE_INDEX, lab2)
    w2 = 0.05 * jax.random.normal(j4, (H2, NUM_LABELS), dtype=jnp.float32)
    b2 = 0.1 * jax.random.normal(j5, (NUM_LABELS,), dtype=jnp.float32)

    logits2, loss2 = head(x2, lab2, w2, b2, row_tile=16)
    jax.block_until_ready((logits2, loss2))
    ref_logits2, ref_loss2 = reference(x2, lab2, w2, b2)
    ref_logits2_bf = ref_logits2.astype(jnp.bfloat16).astype(jnp.float32)
    assert jnp.allclose(logits2, ref_logits2_bf, atol=5e-3), "ragged logits mismatch"
    assert jnp.allclose(loss2, ref_loss2, atol=5e-3), "ragged loss mismatch"

    print("KERNEL_OK")
</pallas_src>

<mosaic_0001>
module attributes {stable_mosaic.version = 11 : i64} {
  func.func @kernel(%arg0: i32, %arg1: memref<16x32xbf16, #tpu.memory_space<vmem>>, %arg2: memref<32x128xbf16, #tpu.memory_space<vmem>>, %arg3: memref<1x128xf32, #tpu.memory_space<vmem>>, %arg4: memref<16x1xi32, #tpu.memory_space<vmem>>, %arg5: memref<16x2xbf16, #tpu.memory_space<vmem>>, %arg6: memref<8x128xf32, #tpu.memory_space<vmem>>) attributes {dimension_semantics = [#tpu.dimension_semantics<parallel>], iteration_bounds = array<i64: 1>, scalar_prefetch = 0 : i64, scratch_operands = 0 : i64, tpu.core_type = #tpu.core_type<tc>, window_params = [{transform_indices = @transform_0, window_bounds = array<i64: 16, 32>}, {pipeline_mode = #tpu.pipeline_mode<synchronous>, transform_indices = @transform_1, window_bounds = array<i64: 32, 128>}, {pipeline_mode = #tpu.pipeline_mode<synchronous>, transform_indices = @transform_2, window_bounds = array<i64: 1, 128>}, {transform_indices = @transform_3, window_bounds = array<i64: 16, 1>}, {transform_indices = @transform_4, window_bounds = array<i64: 16, 2>}, {transform_indices = @transform_5, window_bounds = array<i64: 8, 128>}]} {
    %c0 = arith.constant 0 : index
    %c0_0 = arith.constant 0 : index
    %0 = vector.load %arg1[%c0, %c0_0] : memref<16x32xbf16, #tpu.memory_space<vmem>>, vector<16x32xbf16>
    %c0_1 = arith.constant 0 : index
    %c0_2 = arith.constant 0 : index
    %1 = vector.load %arg2[%c0_1, %c0_2] : memref<32x128xbf16, #tpu.memory_space<vmem>>, vector<32x128xbf16>
    %c0_3 = arith.constant 0 : index
    %c0_4 = arith.constant 0 : index
    %2 = vector.load %arg3[%c0_3, %c0_4] : memref<1x128xf32, #tpu.memory_space<vmem>>, vector<1x128xf32>
    %cst = arith.constant dense<0.000000e+00> : vector<16x128xf32>
    %3 = tpu.matmul %0, %1, %cst {dimension_numbers = #tpu.dot_dimension_numbers<[1], [0], [0], [1], [0, 0, 1, 1], [], []>} : vector<16x32xbf16>, vector<32x128xbf16>, vector<16x128xf32> -> vector<16x128xf32>
    %4 = vector.broadcast %2 : vector<1x128xf32> to vector<16x128xf32>
    %5 = arith.addf %3, %4 : vector<16x128xf32>
    %6 = vector.extract_strided_slice %5 {offsets = [0, 0], sizes = [16, 2], strides = [1, 1]} : vector<16x128xf32> to vector<16x2xf32>
    %7 = arith.truncf %6 : vector<16x2xf32> to vector<16x2xbf16>
    %c0_5 = arith.constant 0 : index
    %c0_6 = arith.constant 0 : index
    %8 = vector.load %arg5[%c0_5, %c0_6] : memref<16x2xbf16, #tpu.memory_space<vmem>>, vector<16x2xbf16>
    tpu.vector_store %arg5[%c0_5, %c0_6], %7 {strides = array<i32>} : memref<16x2xbf16, #tpu.memory_space<vmem>>, vector<16x2xbf16>,
    %9 = tpu.iota {dimensions = array<i32: 1>} : vector<16x128xi32>
    %10 = tpu.iota {dimensions = array<i32: 0>} : vector<16x128xi32>
    %c16_i32 = arith.constant 16 : i32
    %11 = arith.muli %arg0, %c16_i32 : i32
    %12 = vector.broadcast %11 : i32 to vector<16x128xi32>
    %13 = arith.addi %10, %12 : vector<16x128xi32>
    %c0_7 = arith.constant 0 : index
    %c0_8 = arith.constant 0 : index
    %14 = vector.load %arg4[%c0_7, %c0_8] : memref<16x1xi32, #tpu.memory_space<vmem>>, vector<16x1xi32>
    %c-100_i32 = arith.constant -100 : i32
    %15 = vector.broadcast %c-100_i32 : i32 to vector<16x1xi32>
    %16 = arith.cmpi ne, %14, %15 : vector<16x1xi32>
    %c16_i32_9 = arith.constant 16 : i32
    %17 = vector.broadcast %c16_i32_9 : i32 to vector<16x128xi32>
    %18 = arith.cmpi slt, %13, %17 : vector<16x128xi32>
    %19 = vector.broadcast %16 : vector<16x1xi1> to vector<16x128xi1>
    %20 = arith.andi %19, %18 : vector<16x128xi1>
    %c0_i32 = arith.constant 0 : i32
    %21 = vector.broadcast %c0_i32 : i32 to vector<16x1xi32>
    %22 = arith.cmpi eq, %14, %21 : vector<16x1xi32>
    %cst_10 = arith.constant 1.000000e+00 : f32
    %cst_11 = arith.constant -1.000000e+00 : f32
    %23 = vector.broadcast %cst_10 : f32 to vector<16x1xf32>
    %24 = vector.broadcast %cst_11 : f32 to vector<16x1xf32>
    %25 = arith.select %22, %23, %24 : vector<16x1xi1>, vector<16x1xf32>
    %26 = vector.broadcast %25 : vector<16x1xf32> to vector<16x128xf32>
    %27 = arith.mulf %26, %5 : vector<16x128xf32>
    %cst_12 = arith.constant 0.000000e+00 : f32
    %28 = vector.broadcast %cst_12 : f32 to vector<16x128xf32>
    %29 = arith.maximumf %27, %28 : vector<16x128xf32>
    %30 = math.absf %27 : vector<16x128xf32>
    %cst_13 = arith.constant 0.000000e+00 : f32
    %31 = vector.broadcast %cst_13 : f32 to vector<16x128xf32>
    %32 = arith.subf %31, %30 : vector<16x128xf32>
    %33 = math.exp %32 : vector<16x128xf32>
    %cst_14 = arith.constant 1.000000e+00 : f32
    %34 = vector.broadcast %cst_14 : f32 to vector<16x128xf32>
    %35 = arith.addf %34, %33 : vector<16x128xf32>
    %36 = math.log %35 : vector<16x128xf32>
    %37 = arith.addf %29, %36 : vector<16x128xf32>
    %c2_i32 = arith.constant 2 : i32
    %38 = vector.broadcast %c2_i32 : i32 to vector<16x128xi32>
    %39 = arith.cmpi eq, %9, %38 : vector<16x128xi32>
    %40 = arith.andi %20, %39 : vector<16x128xi1>
    %cst_15 = arith.constant 0.000000e+00 : f32
    %41 = vector.broadcast %cst_15 : f32 to vector<16x128xf32>
    %42 = arith.select %40, %37, %41 : vector<16x128xi1>, vector<16x128xf32>
    %c3_i32 = arith.constant 3 : i32
    %43 = vector.broadcast %c3_i32 : i32 to vector<16x128xi32>
    %44 = arith.cmpi eq, %9, %43 : vector<16x128xi32>
    %45 = arith.andi %20, %44 : vector<16x128xi1>
    %cst_16 = arith.constant 1.000000e+00 : f32
    %cst_17 = arith.constant 0.000000e+00 : f32
    %46 = vector.broadcast %cst_16 : f32 to vector<16x128xf32>
    %47 = vector.broadcast %cst_17 : f32 to vector<16x128xf32>
    %48 = arith.select %45, %46, %47 : vector<16x128xi1>, vector<16x128xf32>
    %49 = arith.addf %42, %48 : vector<16x128xf32>
    %cst_18 = arith.constant dense<0.000000e+00> : vector<128xf32>
    %50 = vector.multi_reduction <add>, %49, %cst_18 [0] : vector<16x128xf32> to vector<128xf32>
    %51 = vector.shape_cast %50 : vector<128xf32> to vector<1x128xf32>
    %52 = tpu.iota {dimensions = array<i32: 0>} : vector<8x128xi32>
    %c0_i32_19 = arith.constant 0 : i32
    %53 = vector.broadcast %c0_i32_19 : i32 to vector<8x128xi32>
    %54 = arith.cmpi eq, %52, %53 : vector<8x128xi32>
    %cst_20 = arith.constant 0.000000e+00 : f32
    %55 = vector.shape_cast %51 : vector<1x128xf32> to vector<1x128xf32>
    %56 = vector.broadcast %55 : vector<1x128xf32> to vector<8x128xf32>
    %57 = vector.broadcast %cst_20 : f32 to vector<8x128xf32>
    %58 = arith.select %54, %56, %57 : vector<8x128xi1>, vector<8x128xf32>
    %c0_21 = arith.constant 0 : index
    %c0_22 = arith.constant 0 : index
    %59 = vector.load %arg6[%c0_21, %c0_22] : memref<8x128xf32, #tpu.memory_space<vmem>>, vector<8x128xf32>
    tpu.vector_store %arg6[%c0_21, %c0_22], %58 {strides = array<i32>} : memref<8x128xf32, #tpu.memory_space<vmem>>, vector<8x128xf32>,
    return
  }
  func.func @transform_0(%arg0: i32) -> (i32, i32) {
    %c0_i32 = arith.constant 0 : i32
    %c0_i32_0 = arith.constant 0 : i32
    return %arg0, %c0_i32 : i32, i32
  }
  func.func @transform_1(%arg0: i32) -> (i32, i32) {
    %c0_i32 = arith.constant 0 : i32
    %c0_i32_0 = arith.constant 0 : i32
    %c0_i32_1 = arith.constant 0 : i32
    return %c0_i32, %c0_i32_0 : i32, i32
  }
  func.func @transform_2(%arg0: i32) -> (i32, i32) {
    %c0_i32 = arith.constant 0 : i32
    %c0_i32_0 = arith.constant 0 : i32
    %c0_i32_1 = arith.constant 0 : i32
    return %c0_i32, %c0_i32_0 : i32, i32
  }
  func.func @transform_3(%arg0: i32) -> (i32, i32) {
    %c0_i32 = arith.constant 0 : i32
    %c0_i32_0 = arith.constant 0 : i32
    return %arg0, %c0_i32 : i32, i32
  }
  func.func @transform_4(%arg0: i32) -> (i32, i32) {
    %c0_i32 = arith.constant 0 : i32
    %c0_i32_0 = arith.constant 0 : i32
    return %arg0, %c0_i32 : i32, i32
  }
  func.func @transform_5(%arg0: i32) -> (i32, i32) {
    %c0_i32 = arith.constant 0 : i32
    %c0_i32_0 = arith.constant 0 : i32
    return %arg0, %c0_i32 : i32, i32
  }
}

</mosaic_0001>

<llo_original>
// kernel: roberta_mlp_token_head.1
$region0: #{roberta_mlp_token_head.1}
  #allocation0 [shape = 'u32[]', space=smem, size = 0x4, offset = 0x4, fixed_abs, tag = 'smem constant byte address 0x4 - core index']
  #allocation1 [shape = 'u32[144,128]{1,0:T(1,128)}', space=vmem, size = 0x12000, scoped, tag = 'internal scratch']
  %s0 = inlined_call_operand.vmem [shape: bf16[16,32], index: 0, kind: input, shape index: {}]
  %s1 = inlined_call_operand.vmem [shape: bf16[32,128], index: 1, kind: input, shape index: {}]
  %s2 = inlined_call_operand.vmem [shape: f32[1,128], index: 2, kind: input, shape index: {}]
  %s3 = inlined_call_operand.vmem [shape: s32[16,1], index: 3, kind: input, shape index: {}]
  %s4 = inlined_call_operand.vmem [shape: bf16[16,2], index: 4, kind: output, shape index: {0}]
  %s5 = inlined_call_operand.vmem [shape: f32[8,128], index: 5, kind: output, shape index: {1}]
  %6 = xla_tuple %s4, %s5
  %s7 = sld [smem:[#allocation0]]
  $region34: #{roberta_mlp_token_head.1} parent=0
    _
  %s9 = ssub.s32 1, %s7
  %s10 = scalar_select 0, %s9, %s7
  // Predicated region
  $region2: #{roberta_mlp_token_head.1} parent=0 // pred_check
    _
  $region3: #{roberta_mlp_token_head.1} parent=0 // pred_check_branch
    %12 = sbr.rel (0) target = $region5
  $region4: #{roberta_mlp_token_head.1} parent=0 // pred_region
    _
  $region5: #{roberta_mlp_token_head.1} parent=0 // pred_fallthru
    _
  // Predicated region
  $region6: #{roberta_mlp_token_head.1} parent=0 // pred_check
    _
  $region7: #{roberta_mlp_token_head.1} parent=0 // pred_check_branch
    %14 = sbr.rel (0) target = $region9
  $region8: #{roberta_mlp_token_head.1} parent=0 // pred_region
    _
  $region9: #{roberta_mlp_token_head.1} parent=0 // pred_fallthru
    _
  // Predicated region
  $region10: #{roberta_mlp_token_head.1} parent=0 // pred_check
    _
  $region11: #{roberta_mlp_token_head.1} parent=0 // pred_check_branch
    %16 = sbr.rel (0) target = $region13
  $region12: #{roberta_mlp_token_head.1} parent=0 // pred_region
    _
  $region13: #{roberta_mlp_token_head.1} parent=0 // pred_fallthru
    _
  // Predicated region
  $region14: #{roberta_mlp_token_head.1} parent=0 // pred_check
    _
  $region15: #{roberta_mlp_token_head.1} parent=0 // pred_check_branch
    %18 = sbr.rel (0) target = $region17
  $region16: #{roberta_mlp_token_head.1} parent=0 // pred_region
    _
  $region17: #{roberta_mlp_token_head.1} parent=0 // pred_fallthru
    _
  %v20 = vld [vmem:[%s0] sm:$0xf]
  %v21 = vld [vmem:[%s0 + $0x4] sm:$0xf]
  %v22 = vld [vmem:[%s1] sm:$0xf]
  %v23 = vld [vmem:[%s1 + $0x4] sm:$0xf]
  %v24 = vld [vmem:[%s1 + $0x8] sm:$0xf]
  %v25 = vld [vmem:[%s1 + $0xc] sm:$0xf]
  %v26 = vld [vmem:[%s2] sm:$0x1]
  %v28 = vlaneseq
  %v29 = vshrl.u32 %v28, 7
  %v30 = vsub.s32 0, %v29
  %v31 = vrot.slane %v26, %v30
  %v35 = vunpack.c.l.b16 %v20
  %v36 = vunpack.c.l.b16 %v21
  %v37 = vpack.c.b16 %v36, %v35
  %v42 = vunpack.c.l.b16 %v22
  %v43 = vunpack.c.l.b16 %v23
  %v44 = vunpack.c.l.b16 %v24
  %v45 = vunpack.c.l.b16 %v25
  %v46 = vpack.c.b16 %v43, %v42
  %v47 = vpack.c.b16 %v45, %v44
  %vm50 = vcmask 261120
  %v52 = vsel %vm50, %v37, 0
  %54 = vmatprep.subr.bf16.mxu0 0
  %55 = vmatpush1.bf16.msra.mxu0 %v46
  %56 = vmatprep.subr.bf16.mxu0 0
  %57 = vmatpush1.bf16.msra.mxu0 %v47
  %58 = vmatprep.subr.bf16.mxu0 0
  %59 = vmatpush1.bf16.msra.mxu0 0
  %60 = vmatprep.subr.bf16.mxu0 0
  %61 = vmatpush1.bf16.msra.mxu0 0
  %62 = vmatprep.subr.bf16.mxu0 0
  %63 = vmatpush1.bf16.msra.mxu0 0
  %64 = vmatprep.subr.bf16.mxu0 0
  %65 = vmatpush1.bf16.msra.mxu0 0
  %66 = vmatprep.subr.bf16.mxu0 0
  %67 = vmatpush1.bf16.msra.mxu0 0
  %68 = vmatprep.subr.bf16.mxu0 0
  %69 = vmatpush1.bf16.msra.mxu0 0
  %70 = vmatprep.subr.bf16.mxu0 0
  %71 = vmatpush1.bf16.msra.mxu0 0
  %72 = vmatprep.subr.bf16.mxu0 0
  %73 = vmatpush1.bf16.msra.mxu0 0
  %74 = vmatprep.subr.bf16.mxu0 0
  %75 = vmatpush1.bf16.msra.mxu0 0
  %76 = vmatprep.subr.bf16.mxu0 0
  %77 = vmatpush1.bf16.msra.mxu0 0
  %78 = vmatprep.subr.bf16.mxu0 0
  %79 = vmatpush1.bf16.msra.mxu0 0
  %80 = vmatprep.subr.bf16.mxu0 0
  %81 = vmatpush1.bf16.msra.mxu0 0
  %82 = vmatprep.subr.bf16.mxu0 0
  %83 = vmatpush1.bf16.msra.mxu0 0
  %84 = vmatprep.subr.bf16.mxu0 0
  %85 = vmatpush1.bf16.msra.mxu0 0
  %86 = vmatprep.mubr.bf16.mxu0 0
  %87 = vmatmul.mubr.bf16.gmra.mrb[0].mxu0 %v52
  %v88 = vpop.f32.mrb[0].mxu0
  %v89 = vadd.f32 %v31, %v88
  %v90 = vpop.f32.mrb[0].mxu0
  %v91 = vpop.f32.mrb[0].mxu0
  %v92 = vadd.f32 %v31, %v91
  %v93 = vpop.f32.mrb[0].mxu0
  %94 = vdwg.mxu0
  %v95 = vpack.c.bf16 %v92, %v89
  %v97 = vunpack.c.l.b16 %v95
  %v98 = vunpack.c.h.b16 %v95
  %v99 = vpack.c.b16 %v97, %v97
  %v100 = vpack.c.b16 %v98, %v98
  %vm103 = vcmask 11264
  %104 = vst.msk [vmem:[%s4] sm:$0xf] %vm103, %v99
  %105 = vst.msk [vmem:[%s4 + $0x4] sm:$0xf] %vm103, %v100
  %v106 = vlaneseq
  %v107 = vand.u32 %v106, 127
  %v108 = vlaneseq
  %v109 = vshrl.u32 %v108, 7
  %v110 = vadd.s32 %v109, 8
  %s111 = smul.u32 0, 16
  %v112 = vstv %s111
  %v113 = vadd.s32 %v109, %v112
  %v114 = vadd.s32 %v110, %v112
  %v115 = vld [vmem:[%s3] sm:$0xff]
  %v116 = vld [vmem:[%s3 + $0x8] sm:$0xff]
  %vm117 = vcmp.ne.s32.totalorder %v115, 4294967196
  %vm118 = vcmp.ne.s32.totalorder %v116, 4294967196
  %vm119 = vcmp.lt.s32.totalorder %v113, 16
  %vm120 = vcmp.lt.s32.totalorder %v114, 16
  %v121 = vsel %vm117, 1, 0
  %v122 = vsel %vm118, 1, 0
  %123 = vset.pattern.permute.xlu0 0
  %124 = vperm.xlu0 %123, %v121
  %v125 = vpop.permute.xlu0 %124
  %126 = vset.pattern.permute.xlu0 0
  %127 = vperm.xlu0 %126, %v122
  %v128 = vpop.permute.xlu0 %127
  %vm129 = vcmp.eq.s32.totalorder %v125, 1
  %vm130 = vcmp.eq.s32.totalorder %v128, 1
  %vm131 = vmand %vm129, %vm119
  %vm132 = vmand %vm130, %vm120
  %vm133 = vcmp.eq.s32.totalorder %v115, 0
  %vm134 = vcmp.eq.s32.totalorder %v116, 0
  %v135 = vsel %vm133, 1.0, -1.0
  %v136 = vsel %vm134, 1.0, -1.0
  %138 = vset.pattern.permute.xlu0 0
  %139 = vperm.xlu0 %138, %v135
  %v140 = vpop.permute.xlu0 %139
  %143 = vset.pattern.permute.xlu0 0
  %144 = vperm.xlu0 %143, %v136
  %v145 = vpop.permute.xlu0 %144
  %v147 = vmul.f32 %v140, %v89
  %v148 = vmul.f32 %v145, %v92
  %v149 = vmax.f32 %v147, 0.0
  %v150 = vmax.f32 %v148, 0.0
  %v151 = vand.u32 2147483647, %v147
  %v152 = vand.u32 2147483647, %v148
  %v153 = vsub.f32 0.0, %v151
  %v154 = vsub.f32 0.0, %v152
  %v155 = vmul.f32 %v153, 1.442695
  %v156 = vpow.pop %v155
  %v157 = vmul.f32 %v154, 1.442695
  %v158 = vpow.pop %v157
  %v159 = vadd.f32 %v156, 1.0
  %v160 = vadd.f32 %v158, 1.0
  %v161 = vlog2.pop %v159
  %v162 = vmul.f32 %v161, 0.6931472
  %v163 = vlog2.pop %v160
  %v164 = vmul.f32 %v163, 0.6931472
  %v165 = vadd.f32 %v149, %v162
  %v166 = vadd.f32 %v150, %v164
  %vm167 = vcmp.eq.s32.totalorder %v107, 2
  %vm168 = vmand %vm131, %vm167
  %vm169 = vmand %vm132, %vm167
  %v170 = vsel %vm168, %v165, 0.0
  %v171 = vsel %vm169, %v166, 0.0
  %vm172 = vcmp.eq.s32.totalorder %v107, 3
  %vm173 = vmand %vm131, %vm172
  %vm174 = vmand %vm132, %vm172
  %v175 = vsel %vm173, 1.0, 0.0
  %v176 = vsel %vm174, 1.0, 0.0
  %v177 = vadd.f32 %v170, %v175
  %v178 = vadd.f32 %v171, %v176
  %v179 = vadd.f32 %v177, %v178
  %v180 = vrot.slane %v179, 4
  %v181 = vadd.f32 %v179, %v180
  %v182 = vrot.slane %v181, 2
  %v183 = vadd.f32 %v181, %v182
  %v184 = vrot.slane %v183, 1
  %v185 = vadd.f32 %v183, %v184
  %vm186 = vcmp.eq.s32.totalorder %v109, 0
  %v187 = vsel %vm186, %v185, 0.0
  %188 = vst [vmem:[%s5] sm:$0xff] %v187
  // Predicated region
  $region18: #{roberta_mlp_token_head.1} parent=0 // pred_check
    _
  $region19: #{roberta_mlp_token_head.1} parent=0 // pred_check_branch
    %190 = sbr.rel (0) target = $region21
  $region20: #{roberta_mlp_token_head.1} parent=0 // pred_region
    _
  $region21: #{roberta_mlp_token_head.1} parent=0 // pred_fallthru
    _
  // Predicated region
  $region22: #{roberta_mlp_token_head.1} parent=0 // pred_check
    _
  $region23: #{roberta_mlp_token_head.1} parent=0 // pred_check_branch
    %192 = sbr.rel (0) target = $region25
  $region24: #{roberta_mlp_token_head.1} parent=0 // pred_region
    _
  $region25: #{roberta_mlp_token_head.1} parent=0 // pred_fallthru
    _
  // Predicated region
  $region26: #{roberta_mlp_token_head.1} parent=0 // pred_check
    _
  $region27: #{roberta_mlp_token_head.1} parent=0 // pred_check_branch
    %194 = sbr.rel (0) target = $region29
  $region28: #{roberta_mlp_token_head.1} parent=0 // pred_region
    _
  $region29: #{roberta_mlp_token_head.1} parent=0 // pred_fallthru
    _
  // Predicated region
  $region30: #{roberta_mlp_token_head.1} parent=0 // pred_check
    _
  $region31: #{roberta_mlp_token_head.1} parent=0 // pred_check_branch
    %196 = sbr.rel (0) target = $region33
  $region32: #{roberta_mlp_token_head.1} parent=0 // pred_region
    _
  $region33: #{roberta_mlp_token_head.1} parent=0 // pred_fallthru
    _

</llo_original>
